<compile_context>
chip_gen: v7x
topology: tpu7x:2x2x1
jax: 0.10.0
libtpu: 0.0.40
codegen_flags: <defaults>
</compile_context>

<pallas_src>
import functools

import jax
import jax.numpy as jnp
from jax.experimental import pallas as pl
from jax.experimental.pallas import tpu as pltpu

_LANE = 128
_MASK23 = (1 << 23) - 1


def _round_up(x, m):
    return -(-x // m) * m


def _apply_dropout(bits_u32, vals, out_ref, mask_ref, *, threshold, scale):
    # torch: mask = floor(rand + (1 - p)).bool()  <=>  keep iff rand >= p.
    # Integer compare on the low 23 bits of the random word (uniform in
    # [0, 2^23)) against threshold = round(p * 2^23).
    keep = (bits_u32 & jnp.uint32(_MASK23)) >= jnp.uint32(threshold)
    out_ref[...] = jnp.where(keep, vals * scale,
                             jnp.zeros_like(vals)).astype(out_ref.dtype)
    mask_ref[...] = keep.astype(mask_ref.dtype)   # int8 -> 1 byte/elem traffic


def _kernel_hw_prng(seed_ref, vals_ref, out_ref, mask_ref, *, threshold, scale):
    # Two seed words: user seed + block id.  Deterministic regardless of which
    # TensorCore runs the block, and adjacent blocks get decorrelated streams.
    pltpu.prng_seed(seed_ref[0], pl.program_id(0))
    bits = pltpu.prng_random_bits(vals_ref.shape)
    if bits.dtype != jnp.uint32:                  # dtype-agnostic across versions
        bits = pltpu.bitcast(bits, jnp.uint32)
    _apply_dropout(bits, vals_ref[...], out_ref, mask_ref,
                   threshold=threshold, scale=scale)


def _kernel_ext_bits(bits_ref, vals_ref, out_ref, mask_ref, *, threshold, scale):
    _apply_dropout(bits_ref[...], vals_ref[...], out_ref, mask_ref,
                   threshold=threshold, scale=scale)


def sparse_dropout(indices, values, dense_shape, *, dropout=0.0, seed=0,
                   block_rows=1024):
    """Pallas TPU SparseDropout.forward.

    Returns (indices, new_values, keep_mask).  Kept values are scaled by
    1/(1-dropout); dropped values are 0 with keep_mask False.
    """
    assert 0.0 <= dropout < 1.0
    del dense_shape  # shape of the represented sparse tensor is unchanged
    nnz = values.shape[0]

    # Fast path: nothing dropped, scale == 1 -> no kernel launch, no traffic.
    if dropout == 0.0 or nnz == 0:
        return indices, values, jnp.ones((nnz,), dtype=bool)

    # Lane-dense (rows, 128) slab; pad only to the next 8-row boundary
    # (at most 8*128-1 dead elements, never a whole tile-multiple of padding).
    rows = _round_up(pl.cdiv(nnz, _LANE), 8)
    padded = rows * _LANE
    vals2d = jnp.pad(values, (0, padded - nnz)).reshape(rows, _LANE)
    # TODO(synk): accepting a pre-padded (rows, 128) slab (or allow_input_fusion)
    # would remove this pad pass and the trailing reshape/slice entirely.

    # Block choice: big blocks amortize ~0.35us/step overhead; aim for >= 2
    # grid steps so a "parallel" grid can shard across both v7x TensorCores.
    # int8 mask output wants blocked sublane counts that are multiples of 32.
    if rows <= 32:
        tr = rows                      # single block == full array dims
    else:
        tr = min(block_rows, max(32, _round_up(pl.cdiv(rows, 2), 32)))
    grid = (pl.cdiv(rows, tr),)        # partial last block handled by Pallas

    threshold = int(round(float(dropout) * (1 << 23)))
    scale = 1.0 / (1.0 - float(dropout))
    itemsize = values.dtype.itemsize

    out_shapes = (jax.ShapeDtypeStruct((rows, _LANE), values.dtype),
                  jax.ShapeDtypeStruct((rows, _LANE), jnp.int8))
    compiler_params = pltpu.CompilerParams(dimension_semantics=("parallel",))

    if jax.default_backend() == "tpu":
        # On-chip hardware PRNG: no HBM traffic for randomness (9 B/elem total).
        kernel = functools.partial(_kernel_hw_prng,
                                   threshold=threshold, scale=scale)
        cost = pl.CostEstimate(flops=4 * padded, transcendentals=0,
                               bytes_accessed=padded * (2 * itemsize + 1))
        out2d, mask2d = pl.pallas_call(
            kernel,
            out_shape=out_shapes,
            grid_spec=pltpu.PrefetchScalarGridSpec(
                num_scalar_prefetch=1,                 # seed lands in SMEM
                grid=grid,
                in_specs=[pl.BlockSpec((tr, _LANE), lambda i, seed: (i, 0))],
                out_specs=(pl.BlockSpec((tr, _LANE), lambda i, seed: (i, 0)),
                           pl.BlockSpec((tr, _LANE), lambda i, seed: (i, 0))),
            ),
            compiler_params=compiler_params,
            cost_estimate=cost,
        )(jnp.asarray([seed], dtype=jnp.int32), vals2d)
    else:
        # TODO(synk): pltpu.prng_seed/prng_random_bits have no CPU/interpret
        # lowering; off-TPU we stream precomputed random bits instead (one
        # extra 4 B/elem read versus the on-chip PRNG path).
        bits = jax.random.bits(jax.random.PRNGKey(seed), (rows, _LANE),
                               dtype=jnp.uint32)
        kernel = functools.partial(_kernel_ext_bits,
                                   threshold=threshold, scale=scale)
        cost = pl.CostEstimate(flops=4 * padded, transcendentals=0,
                               bytes_accessed=padded * (2 * itemsize + 1 + 4))
        out2d, mask2d = pl.pallas_call(
            kernel,
            out_shape=out_shapes,
            grid=grid,
            in_specs=[pl.BlockSpec((tr, _LANE), lambda i: (i, 0)),
                      pl.BlockSpec((tr, _LANE), lambda i: (i, 0))],
            out_specs=(pl.BlockSpec((tr, _LANE), lambda i: (i, 0)),
                       pl.BlockSpec((tr, _LANE), lambda i: (i, 0))),
            compiler_params=compiler_params,
            cost_estimate=cost,
        )(bits, vals2d)

    new_values = out2d.reshape(-1)[:nnz]
    keep_mask = mask2d.reshape(-1)[:nnz] != 0
    # TODO(synk): torch compacts to only the kept entries (indices[:, mask],
    # values[mask]) which is a dynamic-shape gather with no static-shape Pallas
    # equivalent; we return all nnz slots with dropped values zeroed plus the
    # boolean keep mask instead (same dense tensor).
    return indices, new_values, keep_mask


if __name__ == "__main__":
    key = jax.random.PRNGKey(0)
    k_idx, k_val, k_idx2, k_val2 = jax.random.split(key, 4)

    # Small sparse COO tensor: dense shape (16, 16), nnz = 64.
    dense_shape = (16, 16)
    nnz = 64
    indices = jax.random.randint(k_idx, (2, nnz), 0, 16, dtype=jnp.int32)
    values = jax.random.normal(k_val, (nnz,), dtype=jnp.float32)

    # dropout = 0 -> deterministic identity (fast path, everything kept).
    idx0, val0, mask0 = sparse_dropout(indices, values, dense_shape,
                                       dropout=0.0, seed=0)
    jax.block_until_ready(val0)
    assert bool(jnp.all(mask0))
    assert jnp.allclose(val0, values, atol=1e-6, rtol=1e-6)

    # dropout = 0.5 -> mask / scaling consistency (single-block grid).
    p = 0.5
    idx1, val1, mask1 = sparse_dropout(indices, values, dense_shape,
                                       dropout=p, seed=123)
    jax.block_until_ready(val1)
    expected = jnp.where(mask1, values * (1.0 / (1.0 - p)), 0.0)
    assert val1.shape == (nnz,) and mask1.shape == (nnz,)
    assert idx1.shape == (2, nnz)
    assert jnp.allclose(val1, expected, atol=1e-5, rtol=1e-5)

    # Larger nnz -> multi-step grid with a partial last block.
    big_shape = (512, 512)
    big_nnz = 300 * 128 + 7
    indices_b = jax.random.randint(k_idx2, (2, big_nnz), 0, 512, dtype=jnp.int32)
    values_b = jax.random.normal(k_val2, (big_nnz,), dtype=jnp.float32)
    idx2, val2, mask2 = sparse_dropout(indices_b, values_b, big_shape,
                                       dropout=p, seed=7)
    jax.block_until_ready(val2)
    expected_b = jnp.where(mask2, values_b * (1.0 / (1.0 - p)), 0.0)
    assert val2.shape == (big_nnz,) and mask2.shape == (big_nnz,)
    assert idx2.shape == (2, big_nnz)
    assert jnp.allclose(val2, expected_b, atol=1e-5, rtol=1e-5)
    keep_rate = float(jnp.mean(mask2.astype(jnp.float32)))
    assert 0.4 < keep_rate < 0.6, keep_rate

    print("KERNEL_OK")
</pallas_src>

<mosaic_0001>
module attributes {stable_mosaic.version = 11 : i64} {
  func.func @_kernel_ext_bits(%arg0: i32, %arg1: memref<8x128xi32, #tpu.memory_space<vmem>>, %arg2: memref<8x128xf32, #tpu.memory_space<vmem>>, %arg3: memref<8x128xf32, #tpu.memory_space<vmem>>, %arg4: memref<8x128xi8, #tpu.memory_space<vmem>>) attributes {dimension_semantics = [#tpu.dimension_semantics<parallel>], iteration_bounds = array<i64: 1>, scalar_prefetch = 0 : i64, scratch_operands = 0 : i64, tpu.core_type = #tpu.core_type<tc>, window_params = [{transform_indices = @transform_0, window_bounds = array<i64: 8, 128>}, {transform_indices = @transform_1, window_bounds = array<i64: 8, 128>}, {transform_indices = @transform_2, window_bounds = array<i64: 8, 128>}, {transform_indices = @transform_3, window_bounds = array<i64: 8, 128>}]} {
    %c0 = arith.constant 0 : index
    %c0_0 = arith.constant 0 : index
    %0 = vector.load %arg1[%c0, %c0_0] : memref<8x128xi32, #tpu.memory_space<vmem>>, vector<8x128xi32>
    %c0_1 = arith.constant 0 : index
    %c0_2 = arith.constant 0 : index
    %1 = vector.load %arg2[%c0_1, %c0_2] : memref<8x128xf32, #tpu.memory_space<vmem>>, vector<8x128xf32>
    %c8388607_i32 = arith.constant 8388607 : i32
    %2 = vector.broadcast %c8388607_i32 : i32 to vector<8x128xi32>
    %3 = arith.andi %0, %2 : vector<8x128xi32>
    %c4194304_i32 = arith.constant 4194304 : i32
    %4 = vector.broadcast %c4194304_i32 : i32 to vector<8x128xi32>
    %5 = arith.cmpi uge, %3, %4 : vector<8x128xi32>
    %cst = arith.constant 2.000000e+00 : f32
    %6 = vector.broadcast %cst : f32 to vector<8x128xf32>
    %7 = arith.mulf %1, %6 : vector<8x128xf32>
    %cst_3 = arith.constant 0.000000e+00 : f32
    %8 = vector.broadcast %cst_3 : f32 to vector<8x128xf32>
    %9 = arith.select %5, %7, %8 : vector<8x128xi1>, vector<8x128xf32>
    %c0_4 = arith.constant 0 : index
    %c0_5 = arith.constant 0 : index
    %10 = vector.load %arg3[%c0_4, %c0_5] : memref<8x128xf32, #tpu.memory_space<vmem>>, vector<8x128xf32>
    tpu.vector_store %arg3[%c0_4, %c0_5], %9 {strides = array<i32>} : memref<8x128xf32, #tpu.memory_space<vmem>>, vector<8x128xf32>,
    %11 = arith.extui %5 : vector<8x128xi1> to vector<8x128xi8>
    %c0_6 = arith.constant 0 : index
    %c0_7 = arith.constant 0 : index
    %12 = vector.load %arg4[%c0_6, %c0_7] : memref<8x128xi8, #tpu.memory_space<vmem>>, vector<8x128xi8>
    tpu.vector_store %arg4[%c0_6, %c0_7], %11 {strides = array<i32>} : memref<8x128xi8, #tpu.memory_space<vmem>>, vector<8x128xi8>,
    return
  }
  func.func @transform_0(%arg0: i32) -> (i32, i32) {
    %c0_i32 = arith.constant 0 : i32
    %c0_i32_0 = arith.constant 0 : i32
    return %arg0, %c0_i32 : i32, i32
  }
  func.func @transform_1(%arg0: i32) -> (i32, i32) {
    %c0_i32 = arith.constant 0 : i32
    %c0_i32_0 = arith.constant 0 : i32
    return %arg0, %c0_i32 : i32, i32
  }
  func.func @transform_2(%arg0: i32) -> (i32, i32) {
    %c0_i32 = arith.constant 0 : i32
    %c0_i32_0 = arith.constant 0 : i32
    return %arg0, %c0_i32 : i32, i32
  }
  func.func @transform_3(%arg0: i32) -> (i32, i32) {
    %c0_i32 = arith.constant 0 : i32
    %c0_i32_0 = arith.constant 0 : i32
    return %arg0, %c0_i32 : i32, i32
  }
}

</mosaic_0001>

<llo_original>
// kernel: tpu_custom_call.1
$region0: #{tpu_custom_call.1}
  #allocation0 [shape = 'u32[]', space=smem, size = 0x4, offset = 0x4, fixed_abs, tag = 'smem constant byte address 0x4 - core index']
  #allocation1 [shape = 'u32[144,128]{1,0:T(1,128)}', space=vmem, size = 0x12000, scoped, tag = 'internal scratch']
  %s0 = inlined_call_operand.hbm [shape: u32[8,128], index: 0, kind: input, shape index: {}]
  %s1 = inlined_call_operand.hbm [shape: f32[8,128], index: 1, kind: input, shape index: {}]
  %s2 = inlined_call_operand.hbm [shape: f32[8,128], index: 2, kind: output, shape index: {0}]
  %s3 = inlined_call_operand.hbm [shape: s8[8,128], index: 3, kind: output, shape index: {1}]
  %4 = xla_tuple %s2, %s3
  %s5 = sld [smem:[#allocation0]]
  $region34: #{tpu_custom_call.1} parent=0
    _
  %s7 = ssub.s32 1, %s5
  %s8 = scalar_select 0, %s7, %s5
  $region1: #{tpu_custom_call.1} parent=0
    #allocation2 [shape = 'u8[4096]{0}', space=vmem, size = 0x1000, scoped, tag = 'input window, operand 0, single buffered']
    #allocation3 [shape = 's32[1]{0}', space=sflag, size = 0x4, scoped, tag = 'scoped memory for tpu_custom_call.1']
    #allocation4 [shape = 's32[1]{0}', space=sflag, size = 0x4, scoped, tag = 'scoped memory for tpu_custom_call.1']
    #allocation5 [shape = 'u8[4096]{0}', space=vmem, size = 0x1000, scoped, tag = 'input window, operand 1, single buffered']
    #allocation6 [shape = 's32[1]{0}', space=sflag, size = 0x4, scoped, tag = 'scoped memory for tpu_custom_call.1']
    #allocation7 [shape = 'u8[4096]{0}', space=vmem, size = 0x1000, scoped, tag = 'output window, operand 0, single buffered']
    #allocation8 [shape = 'u8[1024]{0}', space=vmem, size = 0x400, scoped, tag = 'output window, operand 1, single buffered']
    #allocation9 [shape = 's32[1]{0}', space=sflag, size = 0x4, scoped, tag = 'scoped memory for tpu_custom_call.1']
    %9 = vsyncpa [#allocation3], 0
    %10 = vsyncpa [#allocation6], 0
    %11 = vsyncpa [#allocation4], 0
    %12 = vsyncpa [#allocation9], 0
    // Predicated region
    $region2: #{tpu_custom_call.1} parent=1 // pred_check
      _
    $region3: #{tpu_custom_call.1} parent=1 // pred_check_branch
      %14 = sbr.rel (0) target = $region5
    $region4: #{tpu_custom_call.1} parent=1 // pred_region
      %s16 = ssub.s32 128, 128
      %17 = vsyncadd [#allocation3], %s16
      %s19 = sshll.u32 [#allocation2], 4
      %s20 = int_to_ptr.vmem [resolvable:$true] %s19
      %22 = dma.hbm_to_vmem [thread:$0]  %s0, 128, %s20, [#allocation3]
    $region5: #{tpu_custom_call.1} parent=1 // pred_fallthru
      _
    // Predicated region
    $region6: #{tpu_custom_call.1} parent=1 // pred_check
      _
    $region7: #{tpu_custom_call.1} parent=1 // pred_check_branch
      %24 = sbr.rel (0) target = $region9
    $region8: #{tpu_custom_call.1} parent=1 // pred_region
      %s26 = ssub.s32 128, 128
      %27 = vsyncadd [#allocation6], %s26
      %s29 = sshll.u32 [#allocation5], 4
      %s30 = int_to_ptr.vmem [resolvable:$true] %s29
      %32 = dma.hbm_to_vmem [thread:$0]  %s1, 128, %s30, [#allocation6]
    $region9: #{tpu_custom_call.1} parent=1 // pred_fallthru
      _
    // Predicated region
    $region10: #{tpu_custom_call.1} parent=1 // pred_check
      _
    $region11: #{tpu_custom_call.1} parent=1 // pred_check_branch
      %34 = sbr.rel (0) target = $region13
    $region12: #{tpu_custom_call.1} parent=1 // pred_region
      %35 = dma.done [#allocation3], 128
    $region13: #{tpu_custom_call.1} parent=1 // pred_fallthru
      _
    // Predicated region
    $region14: #{tpu_custom_call.1} parent=1 // pred_check
      _
    $region15: #{tpu_custom_call.1} parent=1 // pred_check_branch
      %37 = sbr.rel (0) target = $region17
    $region16: #{tpu_custom_call.1} parent=1 // pred_region
      %38 = dma.done [#allocation6], 128
    $region17: #{tpu_custom_call.1} parent=1 // pred_fallthru
      _
    %v41 = vld [vmem:[#allocation2] sm:$0xff]
    %v42 = vld [vmem:[#allocation5] sm:$0xff]
    %v43 = vand.u32 %v41, 8388607
    %vm44 = vcmp.ge.u32.totalorder %v43, 4194304
    %v45 = vmul.f32 %v42, 2.0
    %v46 = vsel %vm44, %v45, 0.0
    %47 = vst [vmem:[#allocation7] sm:$0xff] %v46
    %vm48 = vmpackc.low %vm44, %vm44
    %vm49 = vmpackc.even %vm48, %vm48
    %v50 = vsel %vm49, 16843009, 0
    %51 = vst [vmem:[#allocation8] sm:$0x3] %v50
    // Predicated region
    $region18: #{tpu_custom_call.1} parent=1 // pred_check
      _
    $region19: #{tpu_custom_call.1} parent=1 // pred_check_branch
      %53 = sbr.rel (0) target = $region21
    $region20: #{tpu_custom_call.1} parent=1 // pred_region
      %s55 = ssub.s32 128, 128
      %56 = vsyncadd [#allocation4], %s55
      %s58 = sshll.u32 [#allocation7], 4
      %s59 = int_to_ptr.vmem [resolvable:$true] %s58
      %61 = dma.vmem_to_hbm [thread:$0]  %s59, 128, %s2, [#allocation4]
    $region21: #{tpu_custom_call.1} parent=1 // pred_fallthru
      _
    // Predicated region
    $region22: #{tpu_custom_call.1} parent=1 // pred_check
      _
    $region23: #{tpu_custom_call.1} parent=1 // pred_check_branch
      %63 = sbr.rel (0) target = $region25
    $region24: #{tpu_custom_call.1} parent=1 // pred_region
      %s65 = ssub.s32 32, 32
      %66 = vsyncadd [#allocation9], %s65
      %s68 = sshll.u32 [#allocation8], 4
      %s69 = int_to_ptr.vmem [resolvable:$true] %s68
      %71 = dma.vmem_to_hbm [thread:$0]  %s69, 32, %s3, [#allocation9]
    $region25: #{tpu_custom_call.1} parent=1 // pred_fallthru
      _
    // Predicated region
    $region26: #{tpu_custom_call.1} parent=1 // pred_check
      _
    $region27: #{tpu_custom_call.1} parent=1 // pred_check_branch
      %73 = sbr.rel (0) target = $region29
    $region28: #{tpu_custom_call.1} parent=1 // pred_region
      %74 = dma.done [#allocation4], 128
    $region29: #{tpu_custom_call.1} parent=1 // pred_fallthru
      _
    // Predicated region
    $region30: #{tpu_custom_call.1} parent=1 // pred_check
      _
    $region31: #{tpu_custom_call.1} parent=1 // pred_check_branch
      %76 = sbr.rel (0) target = $region33
    $region32: #{tpu_custom_call.1} parent=1 // pred_region
      %77 = dma.done [#allocation9], 32
    $region33: #{tpu_custom_call.1} parent=1 // pred_fallthru
      _
    %78 = vsyncpa [#allocation3], 1
    %79 = vsyncpa [#allocation6], 1
    %80 = vsyncpa [#allocation4], 1
    %81 = vsyncpa [#allocation9], 1

</llo_original>
